<compile_context>
chip_gen: v5e
topology: v5e:2x2
jax: 0.10.0
libtpu: 0.0.40
codegen_flags: <defaults>
</compile_context>

<pallas_src>
import functools
import math

import jax
import jax.numpy as jnp
import numpy as np
from jax.experimental import pallas as pl
from jax.experimental.pallas import tpu as pltpu


_VMEM_LIMIT_BYTES = 48 * 1024 * 1024       # safe on v5e/v6e (128 MiB) and v7x (64 MiB)
_RESIDENT_H_MAX_BYTES = 8 * 1024 * 1024    # keep bf16 h fully resident if it fits


def _round_up(v, m):
    return ((v + m - 1) // m) * m


def _pick_tiles(n):
    """Return (n_pad, tm, tk) for the node dimension."""
    if n <= 1024:
        n_pad = _round_up(n, 8)
        return n_pad, n_pad, n_pad          # single block along nodes
    tile = 512                              # >=512 blocks ~ HBM roofline
    n_pad = _round_up(n, tile)
    return n_pad, tile, tile


# ---------------------------------------------------------------------------
# Pallas kernels
# ---------------------------------------------------------------------------

def _fc_relu_kernel(x_ref, w_ref, b_ref, o_ref, ob_ref):
    """o = ReLU(x @ w + b).  x:[TM,F] bf16, w:[F,Hp] bf16, b:[1,Hp] f32.
    Emits f32 result plus a bf16 copy (next layer's matmul operand)."""
    y = jnp.dot(x_ref[...], w_ref[...], preferred_element_type=jnp.float32)
    y = jnp.maximum(y + b_ref[...], 0.0)
    o_ref[...] = y
    ob_ref[...] = y.astype(jnp.bfloat16)


def _gcn_layer_kernel(scal_ref, adj_ref, hk_ref, h0_ref, hres_ref, *rest,
                      tk, resident_h, variant):
    """GCNII layer, tiled over (row-tile i, k-reduction).

    scal:[2] SMEM (alpha, theta); adj:[TM,TK] bf16;
    hk: bf16 matmul operand — either fully resident [Np,Hp] (sliced by k with
        pl.ds) or a [TK,Hp] block, chosen statically via `resident_h`;
    h0,hres:[TM,Hp] f32; w*:[Hp,Hp] bf16;
    outputs: o:[TM,Hp] f32, ob:[TM,Hp] bf16; acc:[TM,Hp] f32 scratch.
    """
    if variant:
        w1_ref, w2_ref, o_ref, ob_ref, acc_ref = rest
    else:
        w1_ref, o_ref, ob_ref, acc_ref = rest
        w2_ref = None

    k = pl.program_id(1)

    @pl.when(k == 0)
    def _():
        acc_ref[...] = jnp.zeros_like(acc_ref)

    if resident_h:
        ks = pl.multiple_of(k * tk, tk)
        hk = hk_ref[pl.ds(ks, tk), :]
    else:
        hk = hk_ref[...]

    acc_ref[...] += jnp.dot(adj_ref[...], hk,
                            preferred_element_type=jnp.float32)

    @pl.when(k == pl.num_programs(1) - 1)
    def _():
        alpha = scal_ref[0]
        theta = scal_ref[1]
        hi = acc_ref[...]
        h0 = h0_ref[...]
        r = (1.0 - alpha) * hi + alpha * h0
        if variant:
            # support = concat([hi, h0], 1) computed as hi@W[:H] + h0@W[H:]
            sw = (jnp.dot(hi.astype(jnp.bfloat16), w1_ref[...],
                          preferred_element_type=jnp.float32)
                  + jnp.dot(h0.astype(jnp.bfloat16), w2_ref[...],
                            preferred_element_type=jnp.float32))
        else:
            sw = jnp.dot(r.astype(jnp.bfloat16), w1_ref[...],
                         preferred_element_type=jnp.float32)
        out = jnp.maximum(theta * sw + (1.0 - theta) * r + hres_ref[...], 0.0)
        o_ref[...] = out
        ob_ref[...] = out.astype(jnp.bfloat16)


# ---------------------------------------------------------------------------
# pallas_call wrappers
# ---------------------------------------------------------------------------

def fc_relu(x_bf16, w_bf16, b_f32, *, tm):
    n_pad, f = x_bf16.shape
    h_pad = w_bf16.shape[1]
    return pl.pallas_call(
        _fc_relu_kernel,
        out_shape=(jax.ShapeDtypeStruct((n_pad, h_pad), jnp.float32),
                   jax.ShapeDtypeStruct((n_pad, h_pad), jnp.bfloat16)),
        grid=(n_pad // tm,),
        in_specs=[
            pl.BlockSpec((tm, f), lambda i: (i, 0)),       # x row tile
            pl.BlockSpec((f, h_pad), lambda i: (0, 0)),    # w resident
            pl.BlockSpec((1, h_pad), lambda i: (0, 0)),    # b resident
        ],
        out_specs=(pl.BlockSpec((tm, h_pad), lambda i: (i, 0)),
                   pl.BlockSpec((tm, h_pad), lambda i: (i, 0))),
        compiler_params=pltpu.CompilerParams(
            dimension_semantics=("parallel",),
            vmem_limit_bytes=_VMEM_LIMIT_BYTES),
    )(x_bf16, w_bf16, b_f32)


def gcn_layer(scal, adj_bf16, h_bf16, h_f32, h0_f32, weights, *,
              variant, tm, tk, resident_h):
    """One GCNII layer. Returns (h_f32, h_bf16)."""
    n_pad, h_pad = h_f32.shape
    grid = (n_pad // tm, n_pad // tk)

    if resident_h:
        hk_spec = pl.BlockSpec((n_pad, h_pad), lambda i, k: (0, 0))   # resident
    else:
        hk_spec = pl.BlockSpec((tk, h_pad), lambda i, k: (k, 0))      # k-blocked

    in_specs = [
        pl.BlockSpec(memory_space=pltpu.MemorySpace.SMEM),   # [alpha, theta]
        pl.BlockSpec((tm, tk), lambda i, k: (i, k)),         # adj tile
        hk_spec,                                             # h (matmul, bf16)
        pl.BlockSpec((tm, h_pad), lambda i, k: (i, 0)),      # h0 (resident in k)
        pl.BlockSpec((tm, h_pad), lambda i, k: (i, 0)),      # h residual (f32)
    ] + [pl.BlockSpec((h_pad, h_pad), lambda i, k: (0, 0)) for _ in weights]

    kernel = functools.partial(_gcn_layer_kernel, tk=tk,
                               resident_h=resident_h, variant=variant)
    return pl.pallas_call(
        kernel,
        out_shape=(jax.ShapeDtypeStruct((n_pad, h_pad), jnp.float32),
                   jax.ShapeDtypeStruct((n_pad, h_pad), jnp.bfloat16)),
        grid=grid,
        in_specs=in_specs,
        out_specs=(pl.BlockSpec((tm, h_pad), lambda i, k: (i, 0)),
                   pl.BlockSpec((tm, h_pad), lambda i, k: (i, 0))),
        scratch_shapes=[pltpu.VMEM((tm, h_pad), jnp.float32)],
        compiler_params=pltpu.CompilerParams(
            dimension_semantics=("parallel", "arbitrary"),
            vmem_limit_bytes=_VMEM_LIMIT_BYTES),
    )(scal, adj_bf16, h_bf16, h0_f32, h_f32, *weights)


# ---------------------------------------------------------------------------
# deepGCN forward (glue in JAX, hot paths in Pallas)
# ---------------------------------------------------------------------------

@functools.partial(jax.jit,
                   static_argnames=("variant", "hk_resident_max_bytes"))
def deep_gcn_forward(x, adj, fc0_w, fc0_b, conv_w, layer_scalars, *,
                     variant, hk_resident_max_bytes=_RESIDENT_H_MAX_BYTES):
    n, _ = x.shape
    nhidden = fc0_w.shape[1]
    n_pad, tm, tk = _pick_tiles(n)
    h_pad = _round_up(nhidden, 128)

    # Pad once (zero rows/cols never feed real rows: adj padded cols are zero;
    # padded hidden columns stay exactly zero because the padded weight
    # columns and bias entries are zero and ReLU(0)=0), cast adj to bf16 once.
    xp = jnp.pad(x, ((0, n_pad - n), (0, 0))).astype(jnp.bfloat16)
    adjp = jnp.pad(adj, ((0, n_pad - n), (0, n_pad - n))).astype(jnp.bfloat16)
    w0p = jnp.pad(fc0_w, ((0, 0), (0, h_pad - nhidden))).astype(jnp.bfloat16)
    b0p = jnp.pad(fc0_b, (0, h_pad - nhidden)).reshape(1, -1).astype(jnp.float32)

    # Pad / cast the stacked conv weights once (not per layer).
    pad_hh = ((0, 0), (0, h_pad - nhidden), (0, h_pad - nhidden))
    if variant:
        w1s = jnp.pad(conv_w[:, :nhidden, :], pad_hh).astype(jnp.bfloat16)
        w2s = jnp.pad(conv_w[:, nhidden:, :], pad_hh).astype(jnp.bfloat16)
    else:
        w1s = jnp.pad(conv_w, pad_hh).astype(jnp.bfloat16)
        w2s = None

    # Keep the bf16 hidden state fully VMEM-resident when it fits the budget.
    resident_h = (n_pad * h_pad * 2) <= hk_resident_max_bytes

    # dropout treated as identity (p = 0.0 / eval mode)
    h, h_bf16 = fc_relu(xp, w0p, b0p, tm=tm)
    h0 = h

    nlayers = conv_w.shape[0]
    for l in range(nlayers):
        scal = layer_scalars[l].astype(jnp.float32)        # [alpha, theta_l]
        weights = (w1s[l], w2s[l]) if variant else (w1s[l],)
        h, h_bf16 = gcn_layer(scal, adjp, h_bf16, h, h0, weights,
                              variant=variant, tm=tm, tk=tk,
                              resident_h=resident_h)
    return h[:n, :nhidden]


# ---------------------------------------------------------------------------
# Params / references
# ---------------------------------------------------------------------------

def _theta(lamda, l):
    return min(1.0, math.log(lamda / l + 1.0))


def make_layer_scalars(nlayers, lamda, alpha):
    thetas = np.array([_theta(lamda, l + 1) for l in range(nlayers)], np.float32)
    return jnp.stack([jnp.full((nlayers,), alpha, jnp.float32),
                      jnp.asarray(thetas)], axis=1)


def init_params(key, nlayers, nfeat, nhidden, nclass, variant):
    """Deterministic init matching the PyTorch module's shapes/distributions."""
    keys = jax.random.split(key, nlayers + 4)
    bnd0 = 1.0 / math.sqrt(nfeat)
    fc0_w = jax.random.uniform(keys[0], (nfeat, nhidden), jnp.float32, -bnd0, bnd0)
    fc0_b = jax.random.uniform(keys[1], (nhidden,), jnp.float32, -bnd0, bnd0)
    # nn.Linear(nhidden, nclass) — initialized for fidelity, unused in forward()
    bnd1 = 1.0 / math.sqrt(nhidden)
    fc1_w = jax.random.uniform(keys[2], (nhidden, nclass), jnp.float32, -bnd1, bnd1)
    fc1_b = jax.random.uniform(keys[3], (nclass,), jnp.float32, -bnd1, bnd1)
    stdv = 1.0 / math.sqrt(nhidden)
    in_f = 2 * nhidden if variant else nhidden
    conv_w = jnp.stack([
        jax.random.uniform(keys[4 + l], (in_f, nhidden), jnp.float32, -stdv, stdv)
        for l in range(nlayers)
    ])
    return {"fc0_w": fc0_w, "fc0_b": fc0_b,
            "fc1_w": fc1_w, "fc1_b": fc1_b,
            "conv_w": conv_w}


def reference_forward(x, adj, fc0_w, fc0_b, conv_w, *, lamda, alpha, variant,
                      bf16_matmul):
    """Pure-JAX reference.  bf16_matmul=True mimics the kernel's dtype policy
    (bf16 matmul operands, f32 accumulate); False is the exact f32 path."""
    def rnd(a):
        return a.astype(jnp.bfloat16).astype(jnp.float32) if bf16_matmul else a

    def mm(a, b):
        return jnp.dot(rnd(a), rnd(b), precision=jax.lax.Precision.HIGHEST)

    h = jnp.maximum(mm(x, fc0_w) + fc0_b, 0.0)
    h0 = h
    nhidden = h.shape[1]
    for i in range(conv_w.shape[0]):
        w = conv_w[i]
        theta = _theta(lamda, i + 1)
        hi = mm(adj, h)
        if variant:
            r = (1.0 - alpha) * hi + alpha * h0
            sw = mm(hi, w[:nhidden]) + mm(h0, w[nhidden:])
        else:
            support = (1.0 - alpha) * hi + alpha * h0
            r = support
            sw = mm(support, w)
        out = theta * sw + (1.0 - theta) * r + h
        h = jnp.maximum(out, 0.0)
    return h


def _make_adj(key, n):
    """Symmetric row-normalized dense adjacency (stand-in for sparse adj)."""
    a = jax.random.uniform(key, (n, n), jnp.float32)
    a = (a + a.T) * 0.5 + jnp.eye(n, dtype=jnp.float32)
    return a / jnp.sum(a, axis=1, keepdims=True)


def _check(out, x, adj, params, *, lamda, alpha, variant):
    ref_m = reference_forward(x, adj, params["fc0_w"], params["fc0_b"],
                              params["conv_w"], lamda=lamda, alpha=alpha,
                              variant=variant, bf16_matmul=True)
    np.testing.assert_allclose(np.asarray(out), np.asarray(ref_m),
                               rtol=2e-3, atol=2e-3)
    ref_f = reference_forward(x, adj, params["fc0_w"], params["fc0_b"],
                              params["conv_w"], lamda=lamda, alpha=alpha,
                              variant=variant, bf16_matmul=False)
    np.testing.assert_allclose(np.asarray(out), np.asarray(ref_f),
                               rtol=5e-2, atol=5e-2)


if __name__ == "__main__":
    LAMDA, ALPHA = 0.5, 0.1
    key = jax.random.PRNGKey(0)

    # ---- small test, both variants (single-block path) ----
    N, NFEAT, NHIDDEN, NCLASS, NLAYERS = 16, 32, 32, 8, 3
    kx, kadj, kp = jax.random.split(key, 3)
    x = jax.random.normal(kx, (N, NFEAT), jnp.float32)
    adj = _make_adj(kadj, N)
    layer_scalars = make_layer_scalars(NLAYERS, LAMDA, ALPHA)

    for variant in (False, True):
        params = init_params(kp, NLAYERS, NFEAT, NHIDDEN, NCLASS, variant)
        out = deep_gcn_forward(x, adj, params["fc0_w"], params["fc0_b"],
                               params["conv_w"], layer_scalars, variant=variant)
        out = jax.block_until_ready(out)
        assert out.shape == (N, NHIDDEN)
        _check(out, x, adj, params, lamda=LAMDA, alpha=ALPHA, variant=variant)

    # ---- medium test: exercises padding + multi-tile k-reduction, and both
    #      the resident-h and k-blocked h paths ----
    N2, NFEAT2, NHIDDEN2, NLAYERS2 = 1300, 64, 64, 2
    kx2, kadj2, kp2 = jax.random.split(jax.random.PRNGKey(1), 3)
    x2 = jax.random.normal(kx2, (N2, NFEAT2), jnp.float32)
    adj2 = _make_adj(kadj2, N2)
    layer_scalars2 = make_layer_scalars(NLAYERS2, LAMDA, ALPHA)
    params2 = init_params(kp2, NLAYERS2, NFEAT2, NHIDDEN2, NCLASS, False)

    for max_bytes in (_RESIDENT_H_MAX_BYTES, 0):   # resident vs k-blocked hk
        out2 = deep_gcn_forward(x2, adj2, params2["fc0_w"], params2["fc0_b"],
                                params2["conv_w"], layer_scalars2,
                                variant=False,
                                hk_resident_max_bytes=max_bytes)
        out2 = jax.block_until_ready(out2)
        assert out2.shape == (N2, NHIDDEN2)
        _check(out2, x2, adj2, params2, lamda=LAMDA, alpha=ALPHA, variant=False)

    print("KERNEL_OK")
</pallas_src>

<mosaic_0001>
module attributes {stable_mosaic.version = 11 : i64} {
  func.func @_fc_relu_kernel(%arg0: i32, %arg1: memref<16x32xbf16, #tpu.memory_space<vmem>>, %arg2: memref<32x128xbf16, #tpu.memory_space<vmem>>, %arg3: memref<1x128xf32, #tpu.memory_space<vmem>>, %arg4: memref<16x128xf32, #tpu.memory_space<vmem>>, %arg5: memref<16x128xbf16, #tpu.memory_space<vmem>>) attributes {dimension_semantics = [#tpu.dimension_semantics<parallel>], iteration_bounds = array<i64: 1>, scalar_prefetch = 0 : i64, scratch_operands = 0 : i64, tpu.core_type = #tpu.core_type<tc>, window_params = [{transform_indices = @transform_0, window_bounds = array<i64: 16, 32>}, {pipeline_mode = #tpu.pipeline_mode<synchronous>, transform_indices = @transform_1, window_bounds = array<i64: 32, 128>}, {pipeline_mode = #tpu.pipeline_mode<synchronous>, transform_indices = @transform_2, window_bounds = array<i64: 1, 128>}, {transform_indices = @transform_3, window_bounds = array<i64: 16, 128>}, {transform_indices = @transform_4, window_bounds = array<i64: 16, 128>}]} {
    %c0 = arith.constant 0 : index
    %c0_0 = arith.constant 0 : index
    %0 = vector.load %arg1[%c0, %c0_0] : memref<16x32xbf16, #tpu.memory_space<vmem>>, vector<16x32xbf16>
    %c0_1 = arith.constant 0 : index
    %c0_2 = arith.constant 0 : index
    %1 = vector.load %arg2[%c0_1, %c0_2] : memref<32x128xbf16, #tpu.memory_space<vmem>>, vector<32x128xbf16>
    %cst = arith.constant dense<0.000000e+00> : vector<16x128xf32>
    %2 = tpu.matmul %0, %1, %cst {dimension_numbers = #tpu.dot_dimension_numbers<[1], [0], [0], [1], [0, 0, 1, 1], [], []>} : vector<16x32xbf16>, vector<32x128xbf16>, vector<16x128xf32> -> vector<16x128xf32>
    %c0_3 = arith.constant 0 : index
    %c0_4 = arith.constant 0 : index
    %3 = vector.load %arg3[%c0_3, %c0_4] : memref<1x128xf32, #tpu.memory_space<vmem>>, vector<1x128xf32>
    %4 = vector.broadcast %3 : vector<1x128xf32> to vector<16x128xf32>
    %5 = arith.addf %2, %4 : vector<16x128xf32>
    %cst_5 = arith.constant 0.000000e+00 : f32
    %6 = vector.broadcast %cst_5 : f32 to vector<16x128xf32>
    %7 = arith.maximumf %5, %6 : vector<16x128xf32>
    %c0_6 = arith.constant 0 : index
    %c0_7 = arith.constant 0 : index
    %8 = vector.load %arg4[%c0_6, %c0_7] : memref<16x128xf32, #tpu.memory_space<vmem>>, vector<16x128xf32>
    tpu.vector_store %arg4[%c0_6, %c0_7], %7 {strides = array<i32>} : memref<16x128xf32, #tpu.memory_space<vmem>>, vector<16x128xf32>,
    %9 = arith.truncf %7 : vector<16x128xf32> to vector<16x128xbf16>
    %c0_8 = arith.constant 0 : index
    %c0_9 = arith.constant 0 : index
    %10 = vector.load %arg5[%c0_8, %c0_9] : memref<16x128xbf16, #tpu.memory_space<vmem>>, vector<16x128xbf16>
    tpu.vector_store %arg5[%c0_8, %c0_9], %9 {strides = array<i32>} : memref<16x128xbf16, #tpu.memory_space<vmem>>, vector<16x128xbf16>,
    return
  }
  func.func @transform_0(%arg0: i32) -> (i32, i32) {
    %c0_i32 = arith.constant 0 : i32
    %c0_i32_0 = arith.constant 0 : i32
    return %arg0, %c0_i32 : i32, i32
  }
  func.func @transform_1(%arg0: i32) -> (i32, i32) {
    %c0_i32 = arith.constant 0 : i32
    %c0_i32_0 = arith.constant 0 : i32
    %c0_i32_1 = arith.constant 0 : i32
    return %c0_i32, %c0_i32_0 : i32, i32
  }
  func.func @transform_2(%arg0: i32) -> (i32, i32) {
    %c0_i32 = arith.constant 0 : i32
    %c0_i32_0 = arith.constant 0 : i32
    %c0_i32_1 = arith.constant 0 : i32
    return %c0_i32, %c0_i32_0 : i32, i32
  }
  func.func @transform_3(%arg0: i32) -> (i32, i32) {
    %c0_i32 = arith.constant 0 : i32
    %c0_i32_0 = arith.constant 0 : i32
    return %arg0, %c0_i32 : i32, i32
  }
  func.func @transform_4(%arg0: i32) -> (i32, i32) {
    %c0_i32 = arith.constant 0 : i32
    %c0_i32_0 = arith.constant 0 : i32
    return %arg0, %c0_i32 : i32, i32
  }
}

module attributes {stable_mosaic.version = 11 : i64} {
  func.func @_gcn_layer_kernel(%arg0: i32, %arg1: i32, %arg2: memref<2xf32, #tpu.memory_space<smem>>, %arg3: memref<16x16xbf16, #tpu.memory_space<vmem>>, %arg4: memref<16x128xbf16, #tpu.memory_space<vmem>>, %arg5: memref<16x128xf32, #tpu.memory_space<vmem>>, %arg6: memref<16x128xf32, #tpu.memory_space<vmem>>, %arg7: memref<128x128xbf16, #tpu.memory_space<vmem>>, %arg8: memref<16x128xf32, #tpu.memory_space<vmem>>, %arg9: memref<16x128xbf16, #tpu.memory_space<vmem>>, %arg10: memref<16x128xf32, #tpu.memory_space<vmem>>) attributes {dimension_semantics = [#tpu.dimension_semantics<parallel>, #tpu.dimension_semantics<arbitrary>], iteration_bounds = array<i64: 1, 1>, scalar_prefetch = 0 : i64, scratch_operands = 1 : i64, tpu.core_type = #tpu.core_type<tc>, window_params = [{transform_indices = @transform_0, window_bounds = array<i64: 2>}, {transform_indices = @transform_1, window_bounds = array<i64: 16, 16>}, {pipeline_mode = #tpu.pipeline_mode<synchronous>, transform_indices = @transform_2, window_bounds = array<i64: 16, 128>}, {transform_indices = @transform_3, window_bounds = array<i64: 16, 128>}, {transform_indices = @transform_4, window_bounds = array<i64: 16, 128>}, {pipeline_mode = #tpu.pipeline_mode<synchronous>, transform_indices = @transform_5, window_bounds = array<i64: 128, 128>}, {transform_indices = @transform_6, window_bounds = array<i64: 16, 128>}, {transform_indices = @transform_7, window_bounds = array<i64: 16, 128>}]} {
    %c0_i32 = arith.constant 0 : i32
    %0 = arith.cmpi eq, %arg1, %c0_i32 : i32
    %1 = arith.extui %0 : i1 to i32
    %c0_i32_0 = arith.constant 0 : i32
    %2 = arith.cmpi ne, %1, %c0_i32_0 : i32
    scf.if %2 {
      %cst_9 = arith.constant 0.000000e+00 : f32
      %15 = vector.broadcast %cst_9 : f32 to vector<16x128xf32>
      %c0_10 = arith.constant 0 : index
      %c0_11 = arith.constant 0 : index
      %16 = vector.load %arg10[%c0_10, %c0_11] : memref<16x128xf32, #tpu.memory_space<vmem>>, vector<16x128xf32>
      tpu.vector_store %arg10[%c0_10, %c0_11], %15 {strides = array<i32>} : memref<16x128xf32, #tpu.memory_space<vmem>>, vector<16x128xf32>,
    } else {
    }
    %c16_i32 = arith.constant 16 : i32
    %3 = arith.muli %arg1, %c16_i32 : i32
    %4 = tpu.assume_multiple %3, 16 : i32
    %5 = arith.index_cast %4 : i32 to index
    %c0 = arith.constant 0 : index
    %6 = vector.load %arg4[%5, %c0] : memref<16x128xbf16, #tpu.memory_space<vmem>>, vector<16x128xbf16>
    %c0_1 = arith.constant 0 : index
    %c0_2 = arith.constant 0 : index
    %7 = vector.load %arg10[%c0_1, %c0_2] : memref<16x128xf32, #tpu.memory_space<vmem>>, vector<16x128xf32>
    %c0_3 = arith.constant 0 : index
    %c0_4 = arith.constant 0 : index
    %8 = vector.load %arg3[%c0_3, %c0_4] : memref<16x16xbf16, #tpu.memory_space<vmem>>, vector<16x16xbf16>
    %cst = arith.constant dense<0.000000e+00> : vector<16x128xf32>
    %9 = tpu.matmul %8, %6, %cst {dimension_numbers = #tpu.dot_dimension_numbers<[1], [0], [0], [1], [0, 0, 1, 1], [], []>} : vector<16x16xbf16>, vector<16x128xbf16>, vector<16x128xf32> -> vector<16x128xf32>
    %10 = arith.addf %7, %9 : vector<16x128xf32>
    %c0_5 = arith.constant 0 : index
    %c0_6 = arith.constant 0 : index
    %11 = vector.load %arg10[%c0_5, %c0_6] : memref<16x128xf32, #tpu.memory_space<vmem>>, vector<16x128xf32>
    tpu.vector_store %arg10[%c0_5, %c0_6], %10 {strides = array<i32>} : memref<16x128xf32, #tpu.memory_space<vmem>>, vector<16x128xf32>,
    %c0_i32_7 = arith.constant 0 : i32
    %12 = arith.cmpi eq, %arg1, %c0_i32_7 : i32
    %13 = arith.extui %12 : i1 to i32
    %c0_i32_8 = arith.constant 0 : i32
    %14 = arith.cmpi ne, %13, %c0_i32_8 : i32
    scf.if %14 {
      %c0_9 = arith.constant 0 : index
      %15 = memref.load %arg2[%c0_9] : memref<2xf32, #tpu.memory_space<smem>>
      %c1 = arith.constant 1 : index
      %16 = memref.load %arg2[%c1] : memref<2xf32, #tpu.memory_space<smem>>
      %c0_10 = arith.constant 0 : index
      %c0_11 = arith.constant 0 : index
      %17 = vector.load %arg10[%c0_10, %c0_11] : memref<16x128xf32, #tpu.memory_space<vmem>>, vector<16x128xf32>
      %c0_12 = arith.constant 0 : index
      %c0_13 = arith.constant 0 : index
      %18 = vector.load %arg5[%c0_12, %c0_13] : memref<16x128xf32, #tpu.memory_space<vmem>>, vector<16x128xf32>
      %cst_14 = arith.constant 1.000000e+00 : f32
      %19 = arith.subf %cst_14, %15 : f32
      %20 = vector.broadcast %19 : f32 to vector<16x128xf32>
      %21 = arith.mulf %20, %17 : vector<16x128xf32>
      %22 = vector.broadcast %15 : f32 to vector<16x128xf32>
      %23 = arith.mulf %22, %18 : vector<16x128xf32>
      %24 = arith.addf %21, %23 : vector<16x128xf32>
      %25 = arith.truncf %24 : vector<16x128xf32> to vector<16x128xbf16>
      %c0_15 = arith.constant 0 : index
      %c0_16 = arith.constant 0 : index
      %26 = vector.load %arg7[%c0_15, %c0_16] : memref<128x128xbf16, #tpu.memory_space<vmem>>, vector<128x128xbf16>
      %cst_17 = arith.constant dense<0.000000e+00> : vector<16x128xf32>
      %27 = tpu.matmul %25, %26, %cst_17 {dimension_numbers = #tpu.dot_dimension_numbers<[1], [0], [0], [1], [0, 0, 1, 1], [], []>} : vector<16x128xbf16>, vector<128x128xbf16>, vector<16x128xf32> -> vector<16x128xf32>
      %28 = vector.broadcast %16 : f32 to vector<16x128xf32>
      %29 = arith.mulf %28, %27 : vector<16x128xf32>
      %cst_18 = arith.constant 1.000000e+00 : f32
      %30 = arith.subf %cst_18, %16 : f32
      %31 = vector.broadcast %30 : f32 to vector<16x128xf32>
      %32 = arith.mulf %31, %24 : vector<16x128xf32>
      %33 = arith.addf %29, %32 : vector<16x128xf32>
      %c0_19 = arith.constant 0 : index
      %c0_20 = arith.constant 0 : index
      %34 = vector.load %arg6[%c0_19, %c0_20] : memref<16x128xf32, #tpu.memory_space<vmem>>, vector<16x128xf32>
      %35 = arith.addf %33, %34 : vector<16x128xf32>
      %cst_21 = arith.constant 0.000000e+00 : f32
      %36 = vector.broadcast %cst_21 : f32 to vector<16x128xf32>
      %37 = arith.maximumf %35, %36 : vector<16x128xf32>
      %c0_22 = arith.constant 0 : index
      %c0_23 = arith.constant 0 : index
      %38 = vector.load %arg8[%c0_22, %c0_23] : memref<16x128xf32, #tpu.memory_space<vmem>>, vector<16x128xf32>
      tpu.vector_store %arg8[%c0_22, %c0_23], %37 {strides = array<i32>} : memref<16x128xf32, #tpu.memory_space<vmem>>, vector<16x128xf32>,
      %39 = arith.truncf %37 : vector<16x128xf32> to vector<16x128xbf16>
      %c0_24 = arith.constant 0 : index
      %c0_25 = arith.constant 0 : index
      %40 = vector.load %arg9[%c0_24, %c0_25] : memref<16x128xbf16, #tpu.memory_space<vmem>>, vector<16x128xbf16>
      tpu.vector_store %arg9[%c0_24, %c0_25], %39 {strides = array<i32>} : memref<16x128xbf16, #tpu.memory_space<vmem>>, vector<16x128xbf16>,
    } else {
    }
    return
  }
  func.func @transform_0(%arg0: i32, %arg1: i32) -> i32 {
    %c0_i32 = arith.constant 0 : i32
    %c0_i32_0 = arith.constant 0 : i32
    return %c0_i32 : i32
  }
  func.func @transform_1(%arg0: i32, %arg1: i32) -> (i32, i32) {
    %c0_i32 = arith.constant 0 : i32
    return %arg0, %arg1 : i32, i32
  }
  func.func @transform_2(%arg0: i32, %arg1: i32) -> (i32, i32) {
    %c0_i32 = arith.constant 0 : i32
    %c0_i32_0 = arith.constant 0 : i32
    %c0_i32_1 = arith.constant 0 : i32
    return %c0_i32, %c0_i32_0 : i32, i32
  }
  func.func @transform_3(%arg0: i32, %arg1: i32) -> (i32, i32) {
    %c0_i32 = arith.constant 0 : i32
    %c0_i32_0 = arith.constant 0 : i32
    return %arg0, %c0_i32 : i32, i32
  }
  func.func @transform_4(%arg0: i32, %arg1: i32) -> (i32, i32) {
    %c0_i32 = arith.constant 0 : i32
    %c0_i32_0 = arith.constant 0 : i32
    return %arg0, %c0_i32 : i32, i32
  }
  func.func @transform_5(%arg0: i32, %arg1: i32) -> (i32, i32) {
    %c0_i32 = arith.constant 0 : i32
    %c0_i32_0 = arith.constant 0 : i32
    %c0_i32_1 = arith.constant 0 : i32
    return %c0_i32, %c0_i32_0 : i32, i32
  }
  func.func @transform_6(%arg0: i32, %arg1: i32) -> (i32, i32) {
    %c0_i32 = arith.constant 0 : i32
    %c0_i32_0 = arith.constant 0 : i32
    return %arg0, %c0_i32 : i32, i32
  }
  func.func @transform_7(%arg0: i32, %arg1: i32) -> (i32, i32) {
    %c0_i32 = arith.constant 0 : i32
    %c0_i32_0 = arith.constant 0 : i32
    return %arg0, %c0_i32 : i32, i32
  }
}

module attributes {stable_mosaic.version = 11 : i64} {
  func.func @_gcn_layer_kernel(%arg0: i32, %arg1: i32, %arg2: memref<2xf32, #tpu.memory_space<smem>>, %arg3: memref<16x16xbf16, #tpu.memory_space<vmem>>, %arg4: memref<16x128xbf16, #tpu.memory_space<vmem>>, %arg5: memref<16x128xf32, #tpu.memory_space<vmem>>, %arg6: memref<16x128xf32, #tpu.memory_space<vmem>>, %arg7: memref<128x128xbf16, #tpu.memory_space<vmem>>, %arg8: memref<16x128xf32, #tpu.memory_space<vmem>>, %arg9: memref<16x128xbf16, #tpu.memory_space<vmem>>, %arg10: memref<16x128xf32, #tpu.memory_space<vmem>>) attributes {dimension_semantics = [#tpu.dimension_semantics<parallel>, #tpu.dimension_semantics<arbitrary>], iteration_bounds = array<i64: 1, 1>, scalar_prefetch = 0 : i64, scratch_operands = 1 : i64, tpu.core_type = #tpu.core_type<tc>, window_params = [{transform_indices = @transform_0, window_bounds = array<i64: 2>}, {transform_indices = @transform_1, window_bounds = array<i64: 16, 16>}, {pipeline_mode = #tpu.pipeline_mode<synchronous>, transform_indices = @transform_2, window_bounds = array<i64: 16, 128>}, {transform_indices = @transform_3, window_bounds = array<i64: 16, 128>}, {transform_indices = @transform_4, window_bounds = array<i64: 16, 128>}, {pipeline_mode = #tpu.pipeline_mode<synchronous>, transform_indices = @transform_5, window_bounds = array<i64: 128, 128>}, {transform_indices = @transform_6, window_bounds = array<i64: 16, 128>}, {transform_indices = @transform_7, window_bounds = array<i64: 16, 128>}]} {
    %c0_i32 = arith.constant 0 : i32
    %0 = arith.cmpi eq, %arg1, %c0_i32 : i32
    %1 = arith.extui %0 : i1 to i32
    %c0_i32_0 = arith.constant 0 : i32
    %2 = arith.cmpi ne, %1, %c0_i32_0 : i32
    scf.if %2 {
      %cst_9 = arith.constant 0.000000e+00 : f32
      %15 = vector.broadcast %cst_9 : f32 to vector<16x128xf32>
      %c0_10 = arith.constant 0 : index
      %c0_11 = arith.constant 0 : index
      %16 = vector.load %arg10[%c0_10, %c0_11] : memref<16x128xf32, #tpu.memory_space<vmem>>, vector<16x128xf32>
      tpu.vector_store %arg10[%c0_10, %c0_11], %15 {strides = array<i32>} : memref<16x128xf32, #tpu.memory_space<vmem>>, vector<16x128xf32>,
    } else {
    }
    %c16_i32 = arith.constant 16 : i32
    %3 = arith.muli %arg1, %c16_i32 : i32
    %4 = tpu.assume_multiple %3, 16 : i32
    %5 = arith.index_cast %4 : i32 to index
    %c0 = arith.constant 0 : index
    %6 = vector.load %arg4[%5, %c0] : memref<16x128xbf16, #tpu.memory_space<vmem>>, vector<16x128xbf16>
    %c0_1 = arith.constant 0 : index
    %c0_2 = arith.constant 0 : index
    %7 = vector.load %arg10[%c0_1, %c0_2] : memref<16x128xf32, #tpu.memory_space<vmem>>, vector<16x128xf32>
    %c0_3 = arith.constant 0 : index
    %c0_4 = arith.constant 0 : index
    %8 = vector.load %arg3[%c0_3, %c0_4] : memref<16x16xbf16, #tpu.memory_space<vmem>>, vector<16x16xbf16>
    %cst = arith.constant dense<0.000000e+00> : vector<16x128xf32>
    %9 = tpu.matmul %8, %6, %cst {dimension_numbers = #tpu.dot_dimension_numbers<[1], [0], [0], [1], [0, 0, 1, 1], [], []>} : vector<16x16xbf16>, vector<16x128xbf16>, vector<16x128xf32> -> vector<16x128xf32>
    %10 = arith.addf %7, %9 : vector<16x128xf32>
    %c0_5 = arith.constant 0 : index
    %c0_6 = arith.constant 0 : index
    %11 = vector.load %arg10[%c0_5, %c0_6] : memref<16x128xf32, #tpu.memory_space<vmem>>, vector<16x128xf32>
    tpu.vector_store %arg10[%c0_5, %c0_6], %10 {strides = array<i32>} : memref<16x128xf32, #tpu.memory_space<vmem>>, vector<16x128xf32>,
    %c0_i32_7 = arith.constant 0 : i32
    %12 = arith.cmpi eq, %arg1, %c0_i32_7 : i32
    %13 = arith.extui %12 : i1 to i32
    %c0_i32_8 = arith.constant 0 : i32
    %14 = arith.cmpi ne, %13, %c0_i32_8 : i32
    scf.if %14 {
      %c0_9 = arith.constant 0 : index
      %15 = memref.load %arg2[%c0_9] : memref<2xf32, #tpu.memory_space<smem>>
      %c1 = arith.constant 1 : index
      %16 = memref.load %arg2[%c1] : memref<2xf32, #tpu.memory_space<smem>>
      %c0_10 = arith.constant 0 : index
      %c0_11 = arith.constant 0 : index
      %17 = vector.load %arg10[%c0_10, %c0_11] : memref<16x128xf32, #tpu.memory_space<vmem>>, vector<16x128xf32>
      %c0_12 = arith.constant 0 : index
      %c0_13 = arith.constant 0 : index
      %18 = vector.load %arg5[%c0_12, %c0_13] : memref<16x128xf32, #tpu.memory_space<vmem>>, vector<16x128xf32>
      %cst_14 = arith.constant 1.000000e+00 : f32
      %19 = arith.subf %cst_14, %15 : f32
      %20 = vector.broadcast %19 : f32 to vector<16x128xf32>
      %21 = arith.mulf %20, %17 : vector<16x128xf32>
      %22 = vector.broadcast %15 : f32 to vector<16x128xf32>
      %23 = arith.mulf %22, %18 : vector<16x128xf32>
      %24 = arith.addf %21, %23 : vector<16x128xf32>
      %25 = arith.truncf %24 : vector<16x128xf32> to vector<16x128xbf16>
      %c0_15 = arith.constant 0 : index
      %c0_16 = arith.constant 0 : index
      %26 = vector.load %arg7[%c0_15, %c0_16] : memref<128x128xbf16, #tpu.memory_space<vmem>>, vector<128x128xbf16>
      %cst_17 = arith.constant dense<0.000000e+00> : vector<16x128xf32>
      %27 = tpu.matmul %25, %26, %cst_17 {dimension_numbers = #tpu.dot_dimension_numbers<[1], [0], [0], [1], [0, 0, 1, 1], [], []>} : vector<16x128xbf16>, vector<128x128xbf16>, vector<16x128xf32> -> vector<16x128xf32>
      %28 = vector.broadcast %16 : f32 to vector<16x128xf32>
      %29 = arith.mulf %28, %27 : vector<16x128xf32>
      %cst_18 = arith.constant 1.000000e+00 : f32
      %30 = arith.subf %cst_18, %16 : f32
      %31 = vector.broadcast %30 : f32 to vector<16x128xf32>
      %32 = arith.mulf %31, %24 : vector<16x128xf32>
      %33 = arith.addf %29, %32 : vector<16x128xf32>
      %c0_19 = arith.constant 0 : index
      %c0_20 = arith.constant 0 : index
      %34 = vector.load %arg6[%c0_19, %c0_20] : memref<16x128xf32, #tpu.memory_space<vmem>>, vector<16x128xf32>
      %35 = arith.addf %33, %34 : vector<16x128xf32>
      %cst_21 = arith.constant 0.000000e+00 : f32
      %36 = vector.broadcast %cst_21 : f32 to vector<16x128xf32>
      %37 = arith.maximumf %35, %36 : vector<16x128xf32>
      %c0_22 = arith.constant 0 : index
      %c0_23 = arith.constant 0 : index
      %38 = vector.load %arg8[%c0_22, %c0_23] : memref<16x128xf32, #tpu.memory_space<vmem>>, vector<16x128xf32>
      tpu.vector_store %arg8[%c0_22, %c0_23], %37 {strides = array<i32>} : memref<16x128xf32, #tpu.memory_space<vmem>>, vector<16x128xf32>,
      %39 = arith.truncf %37 : vector<16x128xf32> to vector<16x128xbf16>
      %c0_24 = arith.constant 0 : index
      %c0_25 = arith.constant 0 : index
      %40 = vector.load %arg9[%c0_24, %c0_25] : memref<16x128xbf16, #tpu.memory_space<vmem>>, vector<16x128xbf16>
      tpu.vector_store %arg9[%c0_24, %c0_25], %39 {strides = array<i32>} : memref<16x128xbf16, #tpu.memory_space<vmem>>, vector<16x128xbf16>,
    } else {
    }
    return
  }
  func.func @transform_0(%arg0: i32, %arg1: i32) -> i32 {
    %c0_i32 = arith.constant 0 : i32
    %c0_i32_0 = arith.constant 0 : i32
    return %c0_i32 : i32
  }
  func.func @transform_1(%arg0: i32, %arg1: i32) -> (i32, i32) {
    %c0_i32 = arith.constant 0 : i32
    return %arg0, %arg1 : i32, i32
  }
  func.func @transform_2(%arg0: i32, %arg1: i32) -> (i32, i32) {
    %c0_i32 = arith.constant 0 : i32
    %c0_i32_0 = arith.constant 0 : i32
    %c0_i32_1 = arith.constant 0 : i32
    return %c0_i32, %c0_i32_0 : i32, i32
  }
  func.func @transform_3(%arg0: i32, %arg1: i32) -> (i32, i32) {
    %c0_i32 = arith.constant 0 : i32
    %c0_i32_0 = arith.constant 0 : i32
    return %arg0, %c0_i32 : i32, i32
  }
  func.func @transform_4(%arg0: i32, %arg1: i32) -> (i32, i32) {
    %c0_i32 = arith.constant 0 : i32
    %c0_i32_0 = arith.constant 0 : i32
    return %arg0, %c0_i32 : i32, i32
  }
  func.func @transform_5(%arg0: i32, %arg1: i32) -> (i32, i32) {
    %c0_i32 = arith.constant 0 : i32
    %c0_i32_0 = arith.constant 0 : i32
    %c0_i32_1 = arith.constant 0 : i32
    return %c0_i32, %c0_i32_0 : i32, i32
  }
  func.func @transform_6(%arg0: i32, %arg1: i32) -> (i32, i32) {
    %c0_i32 = arith.constant 0 : i32
    %c0_i32_0 = arith.constant 0 : i32
    return %arg0, %c0_i32 : i32, i32
  }
  func.func @transform_7(%arg0: i32, %arg1: i32) -> (i32, i32) {
    %c0_i32 = arith.constant 0 : i32
    %c0_i32_0 = arith.constant 0 : i32
    return %arg0, %c0_i32 : i32, i32
  }
}

</mosaic_0001>

<llo_original>
// kernel: deep_gcn_forward.7
$region0: #{deep_gcn_forward.7}
  #allocation0 [shape = 'u32[]', space=smem, size = 0x4, offset = 0x4, fixed_abs, tag = 'smem constant byte address 0x4 - core index']
  #allocation1 [shape = 'u32[72,128]{1,0:T(1,128)}', space=vmem, size = 0x9000, scoped, tag = 'internal scratch']
  #allocation2 [shape = 'f32[16,128]{1,0:T(8,128)}', space=vmem, size = 0x2000, scoped, tag = 'scratch operand']
  %s0 = inlined_call_operand.vmem [shape: f32[2], index: 0, kind: input, shape index: {}]
  %s1 = inlined_call_operand.vmem [shape: bf16[16,16], index: 1, kind: input, shape index: {}]
  %s2 = inlined_call_operand.vmem [shape: bf16[16,128], index: 2, kind: input, shape index: {}]
  %s3 = inlined_call_operand.vmem [shape: f32[16,128], index: 3, kind: input, shape index: {}]
  %s4 = inlined_call_operand.vmem [shape: f32[16,128], index: 4, kind: input, shape index: {}]
  %s5 = inlined_call_operand.vmem [shape: bf16[128,128], index: 5, kind: input, shape index: {}]
  %s6 = inlined_call_operand.hbm [shape: f32[16,128], index: 6, kind: output, shape index: {0}]
  %s7 = inlined_call_operand.hbm [shape: bf16[16,128], index: 7, kind: output, shape index: {1}]
  %8 = xla_tuple %s6, %s7
  %s9 = sld [smem:[#allocation0]]
  $region54: #{deep_gcn_forward.7} parent=0
    _
  %s11 = ssub.s32 1, %s9
  %s12 = scalar_select 0, %s11, %s9
  $region1: #{deep_gcn_forward.7} parent=0
    #allocation3 [shape = 'u8[512]{0}', space=smem, size = 0x200, scoped, tag = 'input window, operand 0, single buffered']
    #allocation4 [shape = 's32[1]{0}', space=sflag, size = 0x4, scoped, tag = 'scoped memory for deep_gcn_forward.7']
    #allocation5 [shape = 's32[1]{0}', space=sflag, size = 0x4, scoped, tag = 'scoped memory for deep_gcn_forward.7']
    #allocation6 [shape = 'u8[8192]{0}', space=vmem, size = 0x2000, scoped, tag = 'output window, operand 0, single buffered']
    #allocation7 [shape = 'u8[4096]{0}', space=vmem, size = 0x1000, scoped, tag = 'output window, operand 1, single buffered']
    #allocation8 [shape = 's32[1]{0}', space=sflag, size = 0x4, scoped, tag = 'scoped memory for deep_gcn_forward.7']
    %13 = vsyncpa [#allocation5], 0
    %14 = vsyncpa [#allocation4], 0
    %15 = vsyncpa [#allocation8], 0
    // Predicated region
    $region2: #{deep_gcn_forward.7} parent=1 // pred_check
      _
    $region3: #{deep_gcn_forward.7} parent=1 // pred_check_branch
      %17 = sbr.rel (0) target = $region5
    $region4: #{deep_gcn_forward.7} parent=1 // pred_region
      %19 = vsyncadd [#allocation5], 0
      %s21 = sshll.u32 %s0, 4
      %s22 = int_to_ptr.vmem [resolvable:$true] %s21
      %24 = dma.vmem_to_smem %s22, 16, [#allocation3], [#allocation5]
    $region5: #{deep_gcn_forward.7} parent=1 // pred_fallthru
      _
    // Predicated region
    $region6: #{deep_gcn_forward.7} parent=1 // pred_check
      _
    $region7: #{deep_gcn_forward.7} parent=1 // pred_check_branch
      %26 = sbr.rel (0) target = $region9
    $region8: #{deep_gcn_forward.7} parent=1 // pred_region
      _
    $region9: #{deep_gcn_forward.7} parent=1 // pred_fallthru
      _
    // Predicated region
    $region10: #{deep_gcn_forward.7} parent=1 // pred_check
      _
    $region11: #{deep_gcn_forward.7} parent=1 // pred_check_branch
      %28 = sbr.rel (0) target = $region13
    $region12: #{deep_gcn_forward.7} parent=1 // pred_region
      _
    $region13: #{deep_gcn_forward.7} parent=1 // pred_fallthru
      _
    // Predicated region
    $region14: #{deep_gcn_forward.7} parent=1 // pred_check
      _
    $region15: #{deep_gcn_forward.7} parent=1 // pred_check_branch
      %30 = sbr.rel (0) target = $region17
    $region16: #{deep_gcn_forward.7} parent=1 // pred_region
      _
    $region17: #{deep_gcn_forward.7} parent=1 // pred_fallthru
      _
    // Predicated region
    $region18: #{deep_gcn_forward.7} parent=1 // pred_check
      _
    $region19: #{deep_gcn_forward.7} parent=1 // pred_check_branch
      %32 = sbr.rel (0) target = $region21
    $region20: #{deep_gcn_forward.7} parent=1 // pred_region
      _
    $region21: #{deep_gcn_forward.7} parent=1 // pred_fallthru
      _
    // Predicated region
    $region22: #{deep_gcn_forward.7} parent=1 // pred_check
      _
    $region23: #{deep_gcn_forward.7} parent=1 // pred_check_branch
      %34 = sbr.rel (0) target = $region25
    $region24: #{deep_gcn_forward.7} parent=1 // pred_region
      _
    $region25: #{deep_gcn_forward.7} parent=1 // pred_fallthru
      _
    // Predicated region
    $region26: #{deep_gcn_forward.7} parent=1 // pred_check
      _
    $region27: #{deep_gcn_forward.7} parent=1 // pred_check_branch
      %36 = sbr.rel (0) target = $region29
    $region28: #{deep_gcn_forward.7} parent=1 // pred_region
      %38 = dma.done [#allocation5], 16
    $region29: #{deep_gcn_forward.7} parent=1 // pred_fallthru
      _
    %39 = sfence
    %p41 = scmp.eq.s32.totalorder 0, 0
    // Predicated region
    $region30: #{deep_gcn_forward.7} parent=1 // pred_check
      %p42 = pneg %p41
    $region31: #{deep_gcn_forward.7} parent=1 // pred_check_branch
      %44 = sbr.rel (%p42) target = $region33
    $region32: #{deep_gcn_forward.7} parent=1 // pred_region
      %45 = vst [vmem:[#allocation2] sm:$0xff] 0.0
      %46 = vst [vmem:[#allocation2 + $0x8] sm:$0xff] 0.0
    $region33: #{deep_gcn_forward.7} parent=1 // pred_fallthru
      _
    %s47 = smul.u32 0, 16
    %s48 = sshra.s32 %s47, 3
    %s49 = sand.u32 %s47, 7
    %s50 = smul.addr %s48, 4
    %s51 = scalar_lea.vmem %s2, %s50
    %v52 = vld [vmem:[%s51] sm:$0xf]
    %v53 = vld [vmem:[%s51 + $0x4] sm:$0xf]
    %v54 = vld [vmem:[#allocation2] sm:$0xff]
    %v55 = vld [vmem:[#allocation2 + $0x8] sm:$0xff]
    %v56 = vld [vmem:[%s1] sm:$0xf]
    %v57 = vld [vmem:[%s1 + $0x4] sm:$0xf]
    %v60 = vunpack.c.l.b16 %v56
    %v61 = vunpack.c.l.b16 %v57
    %v62 = vpack.c.b16 %v61, %v60
    %v65 = vunpack.c.l.b16 %v52
    %v66 = vunpack.c.l.b16 %v53
    %v67 = vpack.c.b16 %v66, %v65
    %vm69 = vcmask 130048
    %v71 = vsel %vm69, %v62, 0
    %73 = vmatpush.bf16.msra.mxu0 0
    %74 = vmatpush.bf16.msra.mxu0 0
    %75 = vmatpush.bf16.msra.mxu0 0
    %76 = vmatpush.bf16.msra.mxu0 0
    %77 = vmatpush.bf16.msra.mxu0 0
    %78 = vmatpush.bf16.msra.mxu0 0
    %79 = vmatpush.bf16.msra.mxu0 0
    %80 = vmatpush.bf16.msra.mxu0 %v67
    %81 = vmatmul.bf16.gmra.mxu0 %v71
    %v82 = vpop.f32.mrf.mxu0
    %v83 = vadd.f32 0.0, %v82
    %v84 = vpop.f32.mrf.mxu0
    %v85 = vadd.f32 0.0, %v84
    %86 = vdwg.mxu0
    %v87 = vadd.f32 %v54, %v83
    %v88 = vadd.f32 %v55, %v85
    %89 = vst [vmem:[#allocation2] sm:$0xff] %v87
    %90 = vst [vmem:[#allocation2 + $0x8] sm:$0xff] %v88
    // Predicated region
    $region34: #{deep_gcn_forward.7} parent=1 // pred_check
      %p91 = pneg %p41
    $region35: #{deep_gcn_forward.7} parent=1 // pred_check_branch
      %93 = sbr.rel (%p91) target = $region37
    $region36: #{deep_gcn_forward.7} parent=1 // pred_region
      %s94 = sld [smem:[#allocation3]]
      %s95 = sld [smem:[#allocation3 + $0x1]]
      %v96 = vld [vmem:[#allocation2] sm:$0xff]
      %v97 = vld [vmem:[#allocation2 + $0x8] sm:$0xff]
      %v98 = vld [vmem:[%s3] sm:$0xff]
      %v99 = vld [vmem:[%s3 + $0x8] sm:$0xff]
      %s100 = ssub.f32 1.0, %s94
      %v101 = vstv %s100
      %v102 = vmul.f32 %v101, %v96
      %v103 = vmul.f32 %v101, %v97
      %v104 = vstv %s94
      %v105 = vmul.f32 %v104, %v98
      %v106 = vmul.f32 %v104, %v99
      %v107 = vadd.f32 %v102, %v105
      %v108 = vadd.f32 %v103, %v106
      %v109 = vpack.c.bf16 %v108, %v107
      %v110 = vld [vmem:[%s5] sm:$0xf]
      %v111 = vld [vmem:[%s5 + $0x4] sm:$0xf]
      %v112 = vld [vmem:[%s5 + $0x8] sm:$0xf]
      %v113 = vld [vmem:[%s5 + $0xc] sm:$0xf]
      %v114 = vld [vmem:[%s5 + $0x10] sm:$0xf]
      %v115 = vld [vmem:[%s5 + $0x14] sm:$0xf]
      %v116 = vld [vmem:[%s5 + $0x18] sm:$0xf]
      %v117 = vld [vmem:[%s5 + $0x1c] sm:$0xf]
      %v118 = vld [vmem:[%s5 + $0x20] sm:$0xf]
      %v119 = vld [vmem:[%s5 + $0x24] sm:$0xf]
      %v120 = vld [vmem:[%s5 + $0x28] sm:$0xf]
      %v121 = vld [vmem:[%s5 + $0x2c] sm:$0xf]
      %v122 = vld [vmem:[%s5 + $0x30] sm:$0xf]
      %v123 = vld [vmem:[%s5 + $0x34] sm:$0xf]
      %v124 = vld [vmem:[%s5 + $0x38] sm:$0xf]
      %v125 = vld [vmem:[%s5 + $0x3c] sm:$0xf]
      %v142 = vunpack.c.l.b16 %v110
      %v143 = vunpack.c.l.b16 %v111
      %v144 = vunpack.c.l.b16 %v112
      %v145 = vunpack.c.l.b16 %v113
      %v146 = vunpack.c.l.b16 %v114
      %v147 = vunpack.c.l.b16 %v115
      %v148 = vunpack.c.l.b16 %v116
      %v149 = vunpack.c.l.b16 %v117
      %v150 = vunpack.c.l.b16 %v118
      %v151 = vunpack.c.l.b16 %v119
      %v152 = vunpack.c.l.b16 %v120
      %v153 = vunpack.c.l.b16 %v121
      %v154 = vunpack.c.l.b16 %v122
      %v155 = vunpack.c.l.b16 %v123
      %v156 = vunpack.c.l.b16 %v124
      %v157 = vunpack.c.l.b16 %v125
      %v158 = vpack.c.b16 %v143, %v142
      %v159 = vpack.c.b16 %v145, %v144
      %v160 = vpack.c.b16 %v147, %v146
      %v161 = vpack.c.b16 %v149, %v148
      %v162 = vpack.c.b16 %v151, %v150
      %v163 = vpack.c.b16 %v153, %v152
      %v164 = vpack.c.b16 %v155, %v154
      %v165 = vpack.c.b16 %v157, %v156
      %174 = vmatpush.bf16.msra.mxu0 %v165
      %175 = vmatpush.bf16.msra.mxu0 %v164
      %176 = vmatpush.bf16.msra.mxu0 %v163
      %177 = vmatpush.bf16.msra.mxu0 %v162
      %178 = vmatpush.bf16.msra.mxu0 %v161
      %179 = vmatpush.bf16.msra.mxu0 %v160
      %180 = vmatpush.bf16.msra.mxu0 %v159
      %181 = vmatpush.bf16.msra.mxu0 %v158
      %182 = vmatmul.bf16.gmra.mxu0 %v109
      %v183 = vpop.f32.mrf.mxu0
      %v184 = vadd.f32 0.0, %v183
      %v185 = vpop.f32.mrf.mxu0
      %v186 = vadd.f32 0.0, %v185
      %187 = vdwg.mxu0
      %v188 = vstv %s95
      %v189 = vmul.f32 %v188, %v184
      %v190 = vmul.f32 %v188, %v186
      %s191 = ssub.f32 1.0, %s95
      %v192 = vstv %s191
      %v193 = vmul.f32 %v192, %v107
      %v194 = vmul.f32 %v192, %v108
      %v195 = vadd.f32 %v189, %v193
      %v196 = vadd.f32 %v190, %v194
      %v197 = vld [vmem:[%s4] sm:$0xff]
      %v198 = vld [vmem:[%s4 + $0x8] sm:$0xff]
      %v199 = vadd.f32 %v195, %v197
      %v200 = vadd.f32 %v196, %v198
      %v201 = vmax.f32 %v199, 0.0
      %v202 = vmax.f32 %v200, 0.0
      %203 = vst [vmem:[#allocation6] sm:$0xff] %v201
      %204 = vst [vmem:[#allocation6 + $0x8] sm:$0xff] %v202
      %v205 = vpack.c.bf16 %v201, %v201
      %v206 = vpack.c.bf16 %v202, %v202
      %207 = vst [vmem:[#allocation7] sm:$0xf] %v205
      %208 = vst [vmem:[#allocation7 + $0x4] sm:$0xf] %v206
    $region37: #{deep_gcn_forward.7} parent=1 // pred_fallthru
      _
    // Predicated region
    $region38: #{deep_gcn_forward.7} parent=1 // pred_check
      _
    $region39: #{deep_gcn_forward.7} parent=1 // pred_check_branch
      %210 = sbr.rel (0) target = $region41
    $region40: #{deep_gcn_forward.7} parent=1 // pred_region
      %212 = vsyncadd [#allocation4], 0
      %s213 = sshll.u32 [#allocation6], 4
      %s214 = int_to_ptr.vmem [resolvable:$true] %s213
      %s215 = sshll.u32 %s6, 4
      %s216 = int_to_ptr.hbm [resolvable:$true] %s215
      %221 = dma.vmem_to_hbm [thread:$0]  %s214, 256, %s216, [#allocation4], 128, 128, 8
    $region41: #{deep_gcn_forward.7} parent=1 // pred_fallthru
      _
    // Predicated region
    $region42: #{deep_gcn_forward.7} parent=1 // pred_check
      _
    $region43: #{deep_gcn_forward.7} parent=1 // pred_check_branch
      %223 = sbr.rel (0) target = $region45
    $region44: #{deep_gcn_forward.7} parent=1 // pred_region
      %225 = vsyncadd [#allocation8], 0
      %s226 = sshll.u32 [#allocation7], 4
      %s227 = int_to_ptr.vmem [resolvable:$true] %s226
      %s228 = sshll.u32 %s7, 4
      %s229 = int_to_ptr.hbm [resolvable:$true] %s228
      %234 = dma.vmem_to_hbm [thread:$0]  %s227, 128, %s229, [#allocation8], 64, 64, 4
    $region45: #{deep_gcn_forward.7} parent=1 // pred_fallthru
      _
    // Predicated region
    $region46: #{deep_gcn_forward.7} parent=1 // pred_check
      _
    $region47: #{deep_gcn_forward.7} parent=1 // pred_check_branch
      %236 = sbr.rel (0) target = $region49
    $region48: #{deep_gcn_forward.7} parent=1 // pred_region
      %238 = dma.done [#allocation4], 256
    $region49: #{deep_gcn_forward.7} parent=1 // pred_fallthru
      _
    // Predicated region
    $region50: #{deep_gcn_forward.7} parent=1 // pred_check
      _
    $region51: #{deep_gcn_forward.7} parent=1 // pred_check_branch
      %240 = sbr.rel (0) target = $region53
    $region52: #{deep_gcn_forward.7} parent=1 // pred_region
      %242 = dma.done [#allocation8], 128
    $region53: #{deep_gcn_forward.7} parent=1 // pred_fallthru
      _
    %243 = vsyncpa [#allocation4], 1
    %244 = vsyncpa [#allocation8], 1
    %245 = vsyncpa [#allocation5], 1

// kernel: deep_gcn_forward.4
$region0: #{deep_gcn_forward.4}
  #allocation0 [shape = 'u32[]', space=smem, size = 0x4, offset = 0x4, fixed_abs, tag = 'smem constant byte address 0x4 - core index']
  #allocation1 [shape = 'u32[72,128]{1,0:T(1,128)}', space=vmem, size = 0x9000, scoped, tag = 'internal scratch']
  %s0 = inlined_call_operand.vmem [shape: bf16[16,32], index: 0, kind: input, shape index: {}]
  %s1 = inlined_call_operand.vmem [shape: bf16[32,128], index: 1, kind: input, shape index: {}]
  %s2 = inlined_call_operand.vmem [shape: f32[1,128], index: 2, kind: input, shape index: {}]
  %s3 = inlined_call_operand.vmem [shape: f32[16,128], index: 3, kind: output, shape index: {0}]
  %s4 = inlined_call_operand.vmem [shape: bf16[16,128], index: 4, kind: output, shape index: {1}]
  %5 = xla_tuple %s3, %s4
  %s6 = sld [smem:[#allocation0]]
  $region30: #{deep_gcn_forward.4} parent=0
    _
  %s8 = ssub.s32 1, %s6
  %s9 = scalar_select 0, %s8, %s6
  // Predicated region
  $region2: #{deep_gcn_forward.4} parent=0 // pred_check
    _
  $region3: #{deep_gcn_forward.4} parent=0 // pred_check_branch
    %11 = sbr.rel (0) target = $region5
  $region4: #{deep_gcn_forward.4} parent=0 // pred_region
    _
  $region5: #{deep_gcn_forward.4} parent=0 // pred_fallthru
    _
  // Predicated region
  $region6: #{deep_gcn_forward.4} parent=0 // pred_check
    _
  $region7: #{deep_gcn_forward.4} parent=0 // pred_check_branch
    %13 = sbr.rel (0) target = $region9
  $region8: #{deep_gcn_forward.4} parent=0 // pred_region
    _
  $region9: #{deep_gcn_forward.4} parent=0 // pred_fallthru
    _
  // Predicated region
  $region10: #{deep_gcn_forward.4} parent=0 // pred_check
    _
  $region11: #{deep_gcn_forward.4} parent=0 // pred_check_branch
    %15 = sbr.rel (0) target = $region13
  $region12: #{deep_gcn_forward.4} parent=0 // pred_region
    _
  $region13: #{deep_gcn_forward.4} parent=0 // pred_fallthru
    _
  %v17 = vld [vmem:[%s0] sm:$0xf]
  %v18 = vld [vmem:[%s0 + $0x4] sm:$0xf]
  %v19 = vld [vmem:[%s1] sm:$0xf]
  %v20 = vld [vmem:[%s1 + $0x4] sm:$0xf]
  %v21 = vld [vmem:[%s1 + $0x8] sm:$0xf]
  %v22 = vld [vmem:[%s1 + $0xc] sm:$0xf]
  %v23 = vld [vmem:[%s2] sm:$0x1]
  %v25 = vperm.slane %v23, 0
  %v29 = vunpack.c.l.b16 %v17
  %v30 = vunpack.c.l.b16 %v18
  %v31 = vpack.c.b16 %v30, %v29
  %v36 = vunpack.c.l.b16 %v19
  %v37 = vunpack.c.l.b16 %v20
  %v38 = vunpack.c.l.b16 %v21
  %v39 = vunpack.c.l.b16 %v22
  %v40 = vpack.c.b16 %v37, %v36
  %v41 = vpack.c.b16 %v39, %v38
  %vm44 = vcmask 261120
  %v46 = vsel %vm44, %v31, 0
  %48 = vmatpush.bf16.msra.mxu0 0
  %49 = vmatpush.bf16.msra.mxu0 0
  %50 = vmatpush.bf16.msra.mxu0 0
  %51 = vmatpush.bf16.msra.mxu0 0
  %52 = vmatpush.bf16.msra.mxu0 0
  %53 = vmatpush.bf16.msra.mxu0 0
  %54 = vmatpush.bf16.msra.mxu0 %v41
  %55 = vmatpush.bf16.msra.mxu0 %v40
  %56 = vmatmul.bf16.gmra.mxu0 %v46
  %v57 = vpop.f32.mrf.mxu0
  %v58 = vadd.f32 %v25, %v57
  %v59 = vpop.f32.mrf.mxu0
  %v60 = vadd.f32 %v25, %v59
  %61 = vdwg.mxu0
  %v62 = vmax.f32 %v58, 0.0
  %v63 = vmax.f32 %v60, 0.0
  %64 = vst [vmem:[%s3] sm:$0xff] %v62
  %65 = vst [vmem:[%s3 + $0x8] sm:$0xff] %v63
  %v66 = vpack.c.bf16 %v62, %v62
  %v67 = vpack.c.bf16 %v63, %v63
  %68 = vst [vmem:[%s4] sm:$0xf] %v66
  %69 = vst [vmem:[%s4 + $0x4] sm:$0xf] %v67
  // Predicated region
  $region14: #{deep_gcn_forward.4} parent=0 // pred_check
    _
  $region15: #{deep_gcn_forward.4} parent=0 // pred_check_branch
    %71 = sbr.rel (0) target = $region17
  $region16: #{deep_gcn_forward.4} parent=0 // pred_region
    _
  $region17: #{deep_gcn_forward.4} parent=0 // pred_fallthru
    _
  // Predicated region
  $region18: #{deep_gcn_forward.4} parent=0 // pred_check
    _
  $region19: #{deep_gcn_forward.4} parent=0 // pred_check_branch
    %73 = sbr.rel (0) target = $region21
  $region20: #{deep_gcn_forward.4} parent=0 // pred_region
    _
  $region21: #{deep_gcn_forward.4} parent=0 // pred_fallthru
    _
  // Predicated region
  $region22: #{deep_gcn_forward.4} parent=0 // pred_check
    _
  $region23: #{deep_gcn_forward.4} parent=0 // pred_check_branch
    %75 = sbr.rel (0) target = $region25
  $region24: #{deep_gcn_forward.4} parent=0 // pred_region
    _
  $region25: #{deep_gcn_forward.4} parent=0 // pred_fallthru
    _
  // Predicated region
  $region26: #{deep_gcn_forward.4} parent=0 // pred_check
    _
  $region27: #{deep_gcn_forward.4} parent=0 // pred_check_branch
    %77 = sbr.rel (0) target = $region29
  $region28: #{deep_gcn_forward.4} parent=0 // pred_region
    _
  $region29: #{deep_gcn_forward.4} parent=0 // pred_fallthru
    _

// kernel: deep_gcn_forward.5
$region0: #{deep_gcn_forward.5}
  #allocation0 [shape = 'u32[]', space=smem, size = 0x4, offset = 0x4, fixed_abs, tag = 'smem constant byte address 0x4 - core index']
  #allocation1 [shape = 'u32[72,128]{1,0:T(1,128)}', space=vmem, size = 0x9000, scoped, tag = 'internal scratch']
  #allocation2 [shape = 'f32[16,128]{1,0:T(8,128)}', space=vmem, size = 0x2000, scoped, tag = 'scratch operand']
  %s0 = inlined_call_operand.vmem [shape: f32[2], index: 0, kind: input, shape index: {}]
  %s1 = inlined_call_operand.vmem [shape: bf16[16,16], index: 1, kind: input, shape index: {}]
  %s2 = inlined_call_operand.vmem [shape: bf16[16,128], index: 2, kind: input, shape index: {}]
  %s3 = inlined_call_operand.vmem [shape: f32[16,128], index: 3, kind: input, shape index: {}, may-alias: {3,4}]
  %s4 = inlined_call_operand.vmem [shape: f32[16,128], index: 4, kind: input, shape index: {}, may-alias: {3,4}]
  %s5 = inlined_call_operand.vmem [shape: bf16[128,128], index: 5, kind: input, shape index: {}]
  %s6 = inlined_call_operand.vmem [shape: f32[16,128], index: 6, kind: output, shape index: {0}]
  %s7 = inlined_call_operand.vmem [shape: bf16[16,128], index: 7, kind: output, shape index: {1}]
  %8 = xla_tuple %s6, %s7
  %s9 = sld [smem:[#allocation0]]
  $region54: #{deep_gcn_forward.5} parent=0
    _
  %s11 = ssub.s32 1, %s9
  %s12 = scalar_select 0, %s11, %s9
  $region1: #{deep_gcn_forward.5} parent=0
    #allocation3 [shape = 'u8[512]{0}', space=smem, size = 0x200, scoped, tag = 'input window, operand 0, single buffered']
    #allocation4 [shape = 's32[1]{0}', space=sflag, size = 0x4, scoped, tag = 'scoped memory for deep_gcn_forward.5']
    %13 = vsyncpa [#allocation4], 0
    // Predicated region
    $region2: #{deep_gcn_forward.5} parent=1 // pred_check
      _
    $region3: #{deep_gcn_forward.5} parent=1 // pred_check_branch
      %15 = sbr.rel (0) target = $region5
    $region4: #{deep_gcn_forward.5} parent=1 // pred_region
      %17 = vsyncadd [#allocation4], 0
      %s19 = sshll.u32 %s0, 4
      %s20 = int_to_ptr.vmem [resolvable:$true] %s19
      %22 = dma.vmem_to_smem %s20, 16, [#allocation3], [#allocation4]
    $region5: #{deep_gcn_forward.5} parent=1 // pred_fallthru
      _
    // Predicated region
    $region6: #{deep_gcn_forward.5} parent=1 // pred_check
      _
    $region7: #{deep_gcn_forward.5} parent=1 // pred_check_branch
      %24 = sbr.rel (0) target = $region9
    $region8: #{deep_gcn_forward.5} parent=1 // pred_region
      _
    $region9: #{deep_gcn_forward.5} parent=1 // pred_fallthru
      _
    // Predicated region
    $region10: #{deep_gcn_forward.5} parent=1 // pred_check
      _
    $region11: #{deep_gcn_forward.5} parent=1 // pred_check_branch
      %26 = sbr.rel (0) target = $region13
    $region12: #{deep_gcn_forward.5} parent=1 // pred_region
      _
    $region13: #{deep_gcn_forward.5} parent=1 // pred_fallthru
      _
    // Predicated region
    $region14: #{deep_gcn_forward.5} parent=1 // pred_check
      _
    $region15: #{deep_gcn_forward.5} parent=1 // pred_check_branch
      %28 = sbr.rel (0) target = $region17
    $region16: #{deep_gcn_forward.5} parent=1 // pred_region
      _
    $region17: #{deep_gcn_forward.5} parent=1 // pred_fallthru
      _
    // Predicated region
    $region18: #{deep_gcn_forward.5} parent=1 // pred_check
      _
    $region19: #{deep_gcn_forward.5} parent=1 // pred_check_branch
      %30 = sbr.rel (0) target = $region21
    $region20: #{deep_gcn_forward.5} parent=1 // pred_region
      _
    $region21: #{deep_gcn_forward.5} parent=1 // pred_fallthru
      _
    // Predicated region
    $region22: #{deep_gcn_forward.5} parent=1 // pred_check
      _
    $region23: #{deep_gcn_forward.5} parent=1 // pred_check_branch
      %32 = sbr.rel (0) target = $region25
    $region24: #{deep_gcn_forward.5} parent=1 // pred_region
      _
    $region25: #{deep_gcn_forward.5} parent=1 // pred_fallthru
      _
    // Predicated region
    $region26: #{deep_gcn_forward.5} parent=1 // pred_check
      _
    $region27: #{deep_gcn_forward.5} parent=1 // pred_check_branch
      %34 = sbr.rel (0) target = $region29
    $region28: #{deep_gcn_forward.5} parent=1 // pred_region
      %36 = dma.done [#allocation4], 16
    $region29: #{deep_gcn_forward.5} parent=1 // pred_fallthru
      _
    %37 = sfence
    %p39 = scmp.eq.s32.totalorder 0, 0
    // Predicated region
    $region30: #{deep_gcn_forward.5} parent=1 // pred_check
      %p40 = pneg %p39
    $region31: #{deep_gcn_forward.5} parent=1 // pred_check_branch
      %42 = sbr.rel (%p40) target = $region33
    $region32: #{deep_gcn_forward.5} parent=1 // pred_region
      %43 = vst [vmem:[#allocation2] sm:$0xff] 0.0
      %44 = vst [vmem:[#allocation2 + $0x8] sm:$0xff] 0.0
    $region33: #{deep_gcn_forward.5} parent=1 // pred_fallthru
      _
    %s45 = smul.u32 0, 16
    %s46 = sshra.s32 %s45, 3
    %s47 = sand.u32 %s45, 7
    %s48 = smul.addr %s46, 4
    %s49 = scalar_lea.vmem %s2, %s48
    %v50 = vld [vmem:[%s49] sm:$0xf]
    %v51 = vld [vmem:[%s49 + $0x4] sm:$0xf]
    %v52 = vld [vmem:[#allocation2] sm:$0xff]
    %v53 = vld [vmem:[#allocation2 + $0x8] sm:$0xff]
    %v54 = vld [vmem:[%s1] sm:$0xf]
    %v55 = vld [vmem:[%s1 + $0x4] sm:$0xf]
    %v58 = vunpack.c.l.b16 %v54
    %v59 = vunpack.c.l.b16 %v55
    %v60 = vpack.c.b16 %v59, %v58
    %v63 = vunpack.c.l.b16 %v50
    %v64 = vunpack.c.l.b16 %v51
    %v65 = vpack.c.b16 %v64, %v63
    %vm67 = vcmask 130048
    %v69 = vsel %vm67, %v60, 0
    %71 = vmatpush.bf16.msra.mxu0 0
    %72 = vmatpush.bf16.msra.mxu0 0
    %73 = vmatpush.bf16.msra.mxu0 0
    %74 = vmatpush.bf16.msra.mxu0 0
    %75 = vmatpush.bf16.msra.mxu0 0
    %76 = vmatpush.bf16.msra.mxu0 0
    %77 = vmatpush.bf16.msra.mxu0 0
    %78 = vmatpush.bf16.msra.mxu0 %v65
    %79 = vmatmul.bf16.gmra.mxu0 %v69
    %v80 = vpop.f32.mrf.mxu0
    %v81 = vadd.f32 0.0, %v80
    %v82 = vpop.f32.mrf.mxu0
    %v83 = vadd.f32 0.0, %v82
    %84 = vdwg.mxu0
    %v85 = vadd.f32 %v52, %v81
    %v86 = vadd.f32 %v53, %v83
    %87 = vst [vmem:[#allocation2] sm:$0xff] %v85
    %88 = vst [vmem:[#allocation2 + $0x8] sm:$0xff] %v86
    // Predicated region
    $region34: #{deep_gcn_forward.5} parent=1 // pred_check
      %p89 = pneg %p39
    $region35: #{deep_gcn_forward.5} parent=1 // pred_check_branch
      %91 = sbr.rel (%p89) target = $region37
    $region36: #{deep_gcn_forward.5} parent=1 // pred_region
      %s92 = sld [smem:[#allocation3]]
      %s93 = sld [smem:[#allocation3 + $0x1]]
      %v94 = vld [vmem:[#allocation2] sm:$0xff]
      %v95 = vld [vmem:[#allocation2 + $0x8] sm:$0xff]
      %v96 = vld [vmem:[%s3] sm:$0xff]
      %v97 = vld [vmem:[%s3 + $0x8] sm:$0xff]
      %s98 = ssub.f32 1.0, %s92
      %v99 = vstv %s98
      %v100 = vmul.f32 %v99, %v94
      %v101 = vmul.f32 %v99, %v95
      %v102 = vstv %s92
      %v103 = vmul.f32 %v102, %v96
      %v104 = vmul.f32 %v102, %v97
      %v105 = vadd.f32 %v100, %v103
      %v106 = vadd.f32 %v101, %v104
      %v107 = vpack.c.bf16 %v106, %v105
      %v108 = vld [vmem:[%s5] sm:$0xf]
      %v109 = vld [vmem:[%s5 + $0x4] sm:$0xf]
      %v110 = vld [vmem:[%s5 + $0x8] sm:$0xf]
      %v111 = vld [vmem:[%s5 + $0xc] sm:$0xf]
      %v112 = vld [vmem:[%s5 + $0x10] sm:$0xf]
      %v113 = vld [vmem:[%s5 + $0x14] sm:$0xf]
      %v114 = vld [vmem:[%s5 + $0x18] sm:$0xf]
      %v115 = vld [vmem:[%s5 + $0x1c] sm:$0xf]
      %v116 = vld [vmem:[%s5 + $0x20] sm:$0xf]
      %v117 = vld [vmem:[%s5 + $0x24] sm:$0xf]
      %v118 = vld [vmem:[%s5 + $0x28] sm:$0xf]
      %v119 = vld [vmem:[%s5 + $0x2c] sm:$0xf]
      %v120 = vld [vmem:[%s5 + $0x30] sm:$0xf]
      %v121 = vld [vmem:[%s5 + $0x34] sm:$0xf]
      %v122 = vld [vmem:[%s5 + $0x38] sm:$0xf]
      %v123 = vld [vmem:[%s5 + $0x3c] sm:$0xf]
      %v140 = vunpack.c.l.b16 %v108
      %v141 = vunpack.c.l.b16 %v109
      %v142 = vunpack.c.l.b16 %v110
      %v143 = vunpack.c.l.b16 %v111
      %v144 = vunpack.c.l.b16 %v112
      %v145 = vunpack.c.l.b16 %v113
      %v146 = vunpack.c.l.b16 %v114
      %v147 = vunpack.c.l.b16 %v115
      %v148 = vunpack.c.l.b16 %v116
      %v149 = vunpack.c.l.b16 %v117
      %v150 = vunpack.c.l.b16 %v118
      %v151 = vunpack.c.l.b16 %v119
      %v152 = vunpack.c.l.b16 %v120
      %v153 = vunpack.c.l.b16 %v121
      %v154 = vunpack.c.l.b16 %v122
      %v155 = vunpack.c.l.b16 %v123
      %v156 = vpack.c.b16 %v141, %v140
      %v157 = vpack.c.b16 %v143, %v142
      %v158 = vpack.c.b16 %v145, %v144
      %v159 = vpack.c.b16 %v147, %v146
      %v160 = vpack.c.b16 %v149, %v148
      %v161 = vpack.c.b16 %v151, %v150
      %v162 = vpack.c.b16 %v153, %v152
      %v163 = vpack.c.b16 %v155, %v154
      %172 = vmatpush.bf16.msra.mxu0 %v163
      %173 = vmatpush.bf16.msra.mxu0 %v162
      %174 = vmatpush.bf16.msra.mxu0 %v161
      %175 = vmatpush.bf16.msra.mxu0 %v160
      %176 = vmatpush.bf16.msra.mxu0 %v159
      %177 = vmatpush.bf16.msra.mxu0 %v158
      %178 = vmatpush.bf16.msra.mxu0 %v157
      %179 = vmatpush.bf16.msra.mxu0 %v156
      %180 = vmatmul.bf16.gmra.mxu0 %v107
      %v181 = vpop.f32.mrf.mxu0
      %v182 = vadd.f32 0.0, %v181
      %v183 = vpop.f32.mrf.mxu0
      %v184 = vadd.f32 0.0, %v183
      %185 = vdwg.mxu0
      %v186 = vstv %s93
      %v187 = vmul.f32 %v186, %v182
      %v188 = vmul.f32 %v186, %v184
      %s189 = ssub.f32 1.0, %s93
      %v190 = vstv %s189
      %v191 = vmul.f32 %v190, %v105
      %v192 = vmul.f32 %v190, %v106
      %v193 = vadd.f32 %v187, %v191
      %v194 = vadd.f32 %v188, %v192
      %v195 = vld [vmem:[%s4] sm:$0xff]
      %v196 = vld [vmem:[%s4 + $0x8] sm:$0xff]
      %v197 = vadd.f32 %v193, %v195
      %v198 = vadd.f32 %v194, %v196
      %v199 = vmax.f32 %v197, 0.0
      %v200 = vmax.f32 %v198, 0.0
      %201 = vst [vmem:[%s6] sm:$0xff] %v199
      %202 = vst [vmem:[%s6 + $0x8] sm:$0xff] %v200
      %v203 = vpack.c.bf16 %v199, %v199
      %v204 = vpack.c.bf16 %v200, %v200
      %205 = vst [vmem:[%s7] sm:$0xf] %v203
      %206 = vst [vmem:[%s7 + $0x4] sm:$0xf] %v204
    $region37: #{deep_gcn_forward.5} parent=1 // pred_fallthru
      _
    // Predicated region
    $region38: #{deep_gcn_forward.5} parent=1 // pred_check
      _
    $region39: #{deep_gcn_forward.5} parent=1 // pred_check_branch
      %208 = sbr.rel (0) target = $region41
    $region40: #{deep_gcn_forward.5} parent=1 // pred_region
      _
    $region41: #{deep_gcn_forward.5} parent=1 // pred_fallthru
      _
    // Predicated region
    $region42: #{deep_gcn_forward.5} parent=1 // pred_check
      _
    $region43: #{deep_gcn_forward.5} parent=1 // pred_check_branch
      %210 = sbr.rel (0) target = $region45
    $region44: #{deep_gcn_forward.5} parent=1 // pred_region
      _
    $region45: #{deep_gcn_forward.5} parent=1 // pred_fallthru
      _
    // Predicated region
    $region46: #{deep_gcn_forward.5} parent=1 // pred_check
      _
    $region47: #{deep_gcn_forward.5} parent=1 // pred_check_branch
      %212 = sbr.rel (0) target = $region49
    $region48: #{deep_gcn_forward.5} parent=1 // pred_region
      _
    $region49: #{deep_gcn_forward.5} parent=1 // pred_fallthru
      _
    // Predicated region
    $region50: #{deep_gcn_forward.5} parent=1 // pred_check
      _
    $region51: #{deep_gcn_forward.5} parent=1 // pred_check_branch
      %214 = sbr.rel (0) target = $region53
    $region52: #{deep_gcn_forward.5} parent=1 // pred_region
      _
    $region53: #{deep_gcn_forward.5} parent=1 // pred_fallthru
      _
    %215 = vsyncpa [#allocation4], 1

</llo_original>
